<compile_context>
chip_gen: v7x
topology: tpu7x:2x2x1
jax: 0.10.0
libtpu: 0.0.40
codegen_flags: <defaults>
</compile_context>

<pallas_src>
import functools

import jax
import jax.numpy as jnp
from jax.experimental import pallas as pl
from jax.experimental.pallas import tpu as pltpu


def _round_up(n, m):
    return ((n + m - 1) // m) * m


def _pad2(a, shape):
    return jnp.zeros(shape, a.dtype).at[: a.shape[0], : a.shape[1]].set(a)


def rnn_seq_kernel(x_ref, h0_ref, Wd_ref, bx_ref, Wout_ref, bout_ref,
                   out_ref, hlast_ref, h_scratch, *, inv_tau):
    """One timestep of the RNN; hidden state carried in VMEM scratch."""
    @pl.when(pl.program_id(0) == 0)
    def _():
        h_scratch[...] = h0_ref[...]

    h = h_scratch[...]                               # (Bp, Hp)  carried state
    x = x_ref[...]                                   # (Bp, Ip)  this timestep

    # rectified tanh of the previous hidden state
    fr_before = jnp.maximum(jnp.tanh(h), 0.0)

    # One fused MXU pass:  [fr | x] @ [J^T ; B^T]  -> (Bp, Hp)
    # (weights are pre-transposed + pre-concatenated in the wrapper, so there
    #  is no in-kernel .T and no separate K=4 matmul)
    z = jnp.concatenate([fr_before, x], axis=-1)     # (Bp, Hp + Ip)
    drive = jnp.dot(z, Wd_ref[...],
                    preferred_element_type=jnp.float32) + bx_ref[...]

    # leaky integrator:  h <- h + (1/tau) * (-h + drive)
    h_new = h + inv_tau * (drive - h)
    fr = jnp.maximum(jnp.tanh(h_new), 0.0)

    # output linear:  fr @ Wout^T + bout   (Wout pre-transposed)
    out = jnp.dot(fr, Wout_ref[...],
                  preferred_element_type=jnp.float32) + bout_ref[...]

    out_ref[...] = out
    h_scratch[...] = h_new
    hlast_ref[...] = h_new


def _prepare_padded_params(J, B, bx, Wout, bout, Hp, Ip, Op):
    """Pad + pre-transpose + fuse the weights (wrapper-side, once per call)."""
    hidden, input_size = B.shape
    out_size = Wout.shape[0]

    # Fused drive weight so that  [fr | x] @ Wd_T == fr @ J^T + x @ B^T.
    Wd_T = jnp.zeros((Hp + Ip, Hp), jnp.float32)
    Wd_T = Wd_T.at[:hidden, :hidden].set(J.T)
    Wd_T = Wd_T.at[Hp:Hp + input_size, :hidden].set(B.T)

    bx_p = jnp.zeros((1, Hp), jnp.float32).at[0, :hidden].set(bx)
    Wout_T = jnp.zeros((Hp, Op), jnp.float32).at[:hidden, :out_size].set(Wout.T)
    bout_p = jnp.zeros((1, Op), jnp.float32).at[0, :out_size].set(bout)
    return Wd_T, bx_p, Wout_T, bout_p


def unregularized_rnn_sequence(xs, h0, J, B, bx, Wout, bout, tau_over_dt=5):
    """Run T timesteps in ONE pallas_call; weights stay resident in VMEM."""
    T, batch, input_size = xs.shape
    hidden = h0.shape[1]
    out_size = Wout.shape[0]

    Bp = _round_up(batch, 8)          # sublane alignment
    Hp = _round_up(hidden, 128)       # lane alignment
    Ip = _round_up(input_size, 128)
    Op = _round_up(out_size, 128)

    Wd_T, bx_p, Wout_T, bout_p = _prepare_padded_params(
        J, B, bx, Wout, bout, Hp, Ip, Op)
    xs_p = jnp.zeros((T, Bp, Ip), jnp.float32).at[:, :batch, :input_size].set(xs)
    h0_p = _pad2(h0, (Bp, Hp))

    kernel = functools.partial(rnn_seq_kernel, inv_tau=1.0 / float(tau_over_dt))

    outs_p, hlast_p = pl.pallas_call(
        kernel,
        grid=(T,),
        out_shape=(
            jax.ShapeDtypeStruct((T, Bp, Op), jnp.float32),
            jax.ShapeDtypeStruct((Bp, Hp), jnp.float32),
        ),
        in_specs=[
            # per-timestep input slice (time dim squeezed)
            pl.BlockSpec((None, Bp, Ip), lambda t: (t, 0, 0)),
            # everything below has a constant block index -> DMA'd once,
            # resident in VMEM for the whole sequence
            pl.BlockSpec((Bp, Hp), lambda t: (0, 0)),          # h0
            pl.BlockSpec((Hp + Ip, Hp), lambda t: (0, 0)),     # [J^T ; B^T]
            pl.BlockSpec((1, Hp), lambda t: (0, 0)),           # bx
            pl.BlockSpec((Hp, Op), lambda t: (0, 0)),          # Wout^T
            pl.BlockSpec((1, Op), lambda t: (0, 0)),           # bout
        ],
        out_specs=(
            pl.BlockSpec((None, Bp, Op), lambda t: (t, 0, 0)),  # per-step output
            pl.BlockSpec((Bp, Hp), lambda t: (0, 0)),           # final hidden
        ),
        scratch_shapes=[pltpu.VMEM((Bp, Hp), jnp.float32)],      # carried h
        compiler_params=pltpu.CompilerParams(
            # time axis carries the hidden state -> must be sequential
            dimension_semantics=("arbitrary",),
            vmem_limit_bytes=64 * 1024 * 1024,
        ),
    )(xs_p, h0_p, Wd_T, bx_p, Wout_T, bout_p)

    return outs_p[:, :batch, :out_size], hlast_p[:batch, :hidden]


def unregularized_rnn_forward(x, h, J, B, bx, Wout, bout, tau_over_dt=5):
    """Single step (the PyTorch module's forward) == T=1 of the same kernel."""
    outs, h_new = unregularized_rnn_sequence(
        x[None], h, J, B, bx, Wout, bout, tau_over_dt)
    return outs[0], h_new


def reference_forward(x, h, J, B, bx, Wout, bout, tau_over_dt=5):
    fr_before = jnp.maximum(jnp.tanh(h), 0.0)
    total = (J @ fr_before.T + B @ x.T + bx[:, None]).T
    h_new = h + (1.0 / tau_over_dt) * (-h + total)
    fr = jnp.maximum(jnp.tanh(h_new), 0.0)
    out = fr @ Wout.T + bout
    return out, h_new


if __name__ == "__main__":
    batch = 2
    input_size = 4
    hidden_size = 32
    output_size = 8
    seq_len = 6
    g, hscale = 1.5, 1.0
    tau_over_dt = 5

    key = jax.random.PRNGKey(0)
    k_j, k_b, k_wout, k_bout, k_x, k_h = jax.random.split(key, 6)

    # Deterministic parameter init mirroring the module's __init__.
    J = jax.random.normal(k_j, (hidden_size, hidden_size), jnp.float32) * (
        g / jnp.sqrt(jnp.float32(hidden_size)))
    B = jax.random.normal(k_b, (hidden_size, input_size), jnp.float32) * (
        hscale / jnp.sqrt(jnp.float32(input_size)))
    bx = jnp.zeros((hidden_size,), jnp.float32)
    bound = 1.0 / jnp.sqrt(jnp.float32(hidden_size))
    Wout = jax.random.uniform(k_wout, (output_size, hidden_size), jnp.float32,
                              -bound, bound)
    bout = jax.random.uniform(k_bout, (output_size,), jnp.float32, -bound, bound)

    xs = jax.random.normal(k_x, (seq_len, batch, input_size), jnp.float32)
    h0 = 0.1 * jax.random.normal(k_h, (batch, hidden_size), jnp.float32)

    # --- single step (module forward semantics) ---
    out, h_new = unregularized_rnn_forward(xs[0], h0, J, B, bx, Wout, bout,
                                           tau_over_dt)
    out = jax.block_until_ready(out)
    h_new = jax.block_until_ready(h_new)

    ref_out, ref_h = reference_forward(xs[0], h0, J, B, bx, Wout, bout,
                                       tau_over_dt)
    assert jnp.allclose(out, ref_out, atol=1e-5, rtol=1e-5)
    assert jnp.allclose(h_new, ref_h, atol=1e-5, rtol=1e-5)

    # --- full sequence in a single kernel (weights resident across T steps) ---
    outs, h_last = unregularized_rnn_sequence(xs, h0, J, B, bx, Wout, bout,
                                              tau_over_dt)
    outs = jax.block_until_ready(outs)
    h_last = jax.block_until_ready(h_last)

    h_ref = h0
    ref_outs = []
    for t in range(seq_len):
        o_t, h_ref = reference_forward(xs[t], h_ref, J, B, bx, Wout, bout,
                                       tau_over_dt)
        ref_outs.append(o_t)
    ref_outs = jnp.stack(ref_outs)

    assert jnp.allclose(outs, ref_outs, atol=1e-4, rtol=1e-4)
    assert jnp.allclose(h_last, h_ref, atol=1e-4, rtol=1e-4)

    print("KERNEL_OK")
</pallas_src>

<mosaic_0001>
module attributes {stable_mosaic.version = 11 : i64} {
  func.func @rnn_seq_kernel(%arg0: i32, %arg1: memref<1x8x128xf32, #tpu.memory_space<vmem>>, %arg2: memref<8x128xf32, #tpu.memory_space<vmem>>, %arg3: memref<256x128xf32, #tpu.memory_space<vmem>>, %arg4: memref<1x128xf32, #tpu.memory_space<vmem>>, %arg5: memref<128x128xf32, #tpu.memory_space<vmem>>, %arg6: memref<1x128xf32, #tpu.memory_space<vmem>>, %arg7: memref<1x8x128xf32, #tpu.memory_space<vmem>>, %arg8: memref<8x128xf32, #tpu.memory_space<vmem>>, %arg9: memref<8x128xf32, #tpu.memory_space<vmem>>) attributes {dimension_semantics = [#tpu.dimension_semantics<arbitrary>], iteration_bounds = array<i64: 1>, scalar_prefetch = 0 : i64, scratch_operands = 1 : i64, tpu.core_type = #tpu.core_type<tc>, window_params = [{transform_indices = @transform_0, window_bounds = array<i64: 1, 8, 128>}, {pipeline_mode = #tpu.pipeline_mode<synchronous>, transform_indices = @transform_1, window_bounds = array<i64: 8, 128>}, {pipeline_mode = #tpu.pipeline_mode<synchronous>, transform_indices = @transform_2, window_bounds = array<i64: 256, 128>}, {pipeline_mode = #tpu.pipeline_mode<synchronous>, transform_indices = @transform_3, window_bounds = array<i64: 1, 128>}, {pipeline_mode = #tpu.pipeline_mode<synchronous>, transform_indices = @transform_4, window_bounds = array<i64: 128, 128>}, {pipeline_mode = #tpu.pipeline_mode<synchronous>, transform_indices = @transform_5, window_bounds = array<i64: 1, 128>}, {transform_indices = @transform_6, window_bounds = array<i64: 1, 8, 128>}, {pipeline_mode = #tpu.pipeline_mode<synchronous>, transform_indices = @transform_7, window_bounds = array<i64: 8, 128>}]} {
    %c0_i32 = arith.constant 0 : i32
    %0 = arith.cmpi eq, %arg0, %c0_i32 : i32
    %1 = arith.extui %0 : i1 to i32
    %c0_i32_0 = arith.constant 0 : i32
    %2 = arith.cmpi ne, %1, %c0_i32_0 : i32
    scf.if %2 {
      %c0_24 = arith.constant 0 : index
      %c0_25 = arith.constant 0 : index
      %32 = vector.load %arg2[%c0_24, %c0_25] : memref<8x128xf32, #tpu.memory_space<vmem>>, vector<8x128xf32>
      %c0_26 = arith.constant 0 : index
      %c0_27 = arith.constant 0 : index
      %33 = vector.load %arg9[%c0_26, %c0_27] : memref<8x128xf32, #tpu.memory_space<vmem>>, vector<8x128xf32>
      tpu.vector_store %arg9[%c0_26, %c0_27], %32 {strides = array<i32>} : memref<8x128xf32, #tpu.memory_space<vmem>>, vector<8x128xf32>,
    } else {
    }
    %c0 = arith.constant 0 : index
    %c0_1 = arith.constant 0 : index
    %3 = vector.load %arg9[%c0, %c0_1] : memref<8x128xf32, #tpu.memory_space<vmem>>, vector<8x128xf32>
    %c0_2 = arith.constant 0 : index
    %c0_3 = arith.constant 0 : index
    %c0_4 = arith.constant 0 : index
    %4 = vector.load %arg1[%c0_2, %c0_3, %c0_4] : memref<1x8x128xf32, #tpu.memory_space<vmem>>, vector<1x8x128xf32>
    %5 = vector.shape_cast %4 : vector<1x8x128xf32> to vector<8x128xf32>
    %6 = math.tanh %3 : vector<8x128xf32>
    %cst = arith.constant 0.000000e+00 : f32
    %7 = vector.broadcast %cst : f32 to vector<8x128xf32>
    %8 = arith.maximumf %6, %7 : vector<8x128xf32>
    %9 = tpu.concatenate %8, %5 in 1 : vector<8x128xf32>, vector<8x128xf32> -> vector<8x256xf32>
    %c0_5 = arith.constant 0 : index
    %c0_6 = arith.constant 0 : index
    %10 = vector.load %arg3[%c0_5, %c0_6] : memref<256x128xf32, #tpu.memory_space<vmem>>, vector<256x128xf32>
    %cst_7 = arith.constant dense<0.000000e+00> : vector<8x128xf32>
    %11 = tpu.matmul %9, %10, %cst_7 {dimension_numbers = #tpu.dot_dimension_numbers<[1], [0], [0], [1], [0, 0, 1, 1], [], []>} : vector<8x256xf32>, vector<256x128xf32>, vector<8x128xf32> -> vector<8x128xf32>
    %c0_8 = arith.constant 0 : index
    %c0_9 = arith.constant 0 : index
    %12 = vector.load %arg4[%c0_8, %c0_9] : memref<1x128xf32, #tpu.memory_space<vmem>>, vector<1x128xf32>
    %13 = vector.broadcast %12 : vector<1x128xf32> to vector<8x128xf32>
    %14 = arith.addf %11, %13 : vector<8x128xf32>
    %15 = arith.subf %14, %3 : vector<8x128xf32>
    %cst_10 = arith.constant 2.000000e-01 : f32
    %16 = vector.broadcast %cst_10 : f32 to vector<8x128xf32>
    %17 = arith.mulf %16, %15 : vector<8x128xf32>
    %18 = arith.addf %3, %17 : vector<8x128xf32>
    %19 = math.tanh %18 : vector<8x128xf32>
    %cst_11 = arith.constant 0.000000e+00 : f32
    %20 = vector.broadcast %cst_11 : f32 to vector<8x128xf32>
    %21 = arith.maximumf %19, %20 : vector<8x128xf32>
    %c0_12 = arith.constant 0 : index
    %c0_13 = arith.constant 0 : index
    %22 = vector.load %arg5[%c0_12, %c0_13] : memref<128x128xf32, #tpu.memory_space<vmem>>, vector<128x128xf32>
    %cst_14 = arith.constant dense<0.000000e+00> : vector<8x128xf32>
    %23 = tpu.matmul %21, %22, %cst_14 {dimension_numbers = #tpu.dot_dimension_numbers<[1], [0], [0], [1], [0, 0, 1, 1], [], []>} : vector<8x128xf32>, vector<128x128xf32>, vector<8x128xf32> -> vector<8x128xf32>
    %c0_15 = arith.constant 0 : index
    %c0_16 = arith.constant 0 : index
    %24 = vector.load %arg6[%c0_15, %c0_16] : memref<1x128xf32, #tpu.memory_space<vmem>>, vector<1x128xf32>
    %25 = vector.broadcast %24 : vector<1x128xf32> to vector<8x128xf32>
    %26 = arith.addf %23, %25 : vector<8x128xf32>
    %c0_17 = arith.constant 0 : index
    %c0_18 = arith.constant 0 : index
    %c0_19 = arith.constant 0 : index
    %27 = vector.load %arg7[%c0_17, %c0_18, %c0_19] : memref<1x8x128xf32, #tpu.memory_space<vmem>>, vector<1x8x128xf32>
    %28 = vector.shape_cast %27 : vector<1x8x128xf32> to vector<8x128xf32>
    %29 = vector.shape_cast %26 : vector<8x128xf32> to vector<1x8x128xf32>
    tpu.vector_store %arg7[%c0_17, %c0_18, %c0_19], %29 {strides = array<i32>} : memref<1x8x128xf32, #tpu.memory_space<vmem>>, vector<1x8x128xf32>,
    %c0_20 = arith.constant 0 : index
    %c0_21 = arith.constant 0 : index
    %30 = vector.load %arg9[%c0_20, %c0_21] : memref<8x128xf32, #tpu.memory_space<vmem>>, vector<8x128xf32>
    tpu.vector_store %arg9[%c0_20, %c0_21], %18 {strides = array<i32>} : memref<8x128xf32, #tpu.memory_space<vmem>>, vector<8x128xf32>,
    %c0_22 = arith.constant 0 : index
    %c0_23 = arith.constant 0 : index
    %31 = vector.load %arg8[%c0_22, %c0_23] : memref<8x128xf32, #tpu.memory_space<vmem>>, vector<8x128xf32>
    tpu.vector_store %arg8[%c0_22, %c0_23], %18 {strides = array<i32>} : memref<8x128xf32, #tpu.memory_space<vmem>>, vector<8x128xf32>,
    return
  }
  func.func @transform_0(%arg0: i32) -> (i32, i32, i32) {
    %c0_i32 = arith.constant 0 : i32
    %c0_i32_0 = arith.constant 0 : i32
    %c0_i32_1 = arith.constant 0 : i32
    return %arg0, %c0_i32, %c0_i32_0 : i32, i32, i32
  }
  func.func @transform_1(%arg0: i32) -> (i32, i32) {
    %c0_i32 = arith.constant 0 : i32
    %c0_i32_0 = arith.constant 0 : i32
    %c0_i32_1 = arith.constant 0 : i32
    return %c0_i32, %c0_i32_0 : i32, i32
  }
  func.func @transform_2(%arg0: i32) -> (i32, i32) {
    %c0_i32 = arith.constant 0 : i32
    %c0_i32_0 = arith.constant 0 : i32
    %c0_i32_1 = arith.constant 0 : i32
    return %c0_i32, %c0_i32_0 : i32, i32
  }
  func.func @transform_3(%arg0: i32) -> (i32, i32) {
    %c0_i32 = arith.constant 0 : i32
    %c0_i32_0 = arith.constant 0 : i32
    %c0_i32_1 = arith.constant 0 : i32
    return %c0_i32, %c0_i32_0 : i32, i32
  }
  func.func @transform_4(%arg0: i32) -> (i32, i32) {
    %c0_i32 = arith.constant 0 : i32
    %c0_i32_0 = arith.constant 0 : i32
    %c0_i32_1 = arith.constant 0 : i32
    return %c0_i32, %c0_i32_0 : i32, i32
  }
  func.func @transform_5(%arg0: i32) -> (i32, i32) {
    %c0_i32 = arith.constant 0 : i32
    %c0_i32_0 = arith.constant 0 : i32
    %c0_i32_1 = arith.constant 0 : i32
    return %c0_i32, %c0_i32_0 : i32, i32
  }
  func.func @transform_6(%arg0: i32) -> (i32, i32, i32) {
    %c0_i32 = arith.constant 0 : i32
    %c0_i32_0 = arith.constant 0 : i32
    %c0_i32_1 = arith.constant 0 : i32
    return %arg0, %c0_i32, %c0_i32_0 : i32, i32, i32
  }
  func.func @transform_7(%arg0: i32) -> (i32, i32) {
    %c0_i32 = arith.constant 0 : i32
    %c0_i32_0 = arith.constant 0 : i32
    %c0_i32_1 = arith.constant 0 : i32
    return %c0_i32, %c0_i32_0 : i32, i32
  }
}

</mosaic_0001>

<llo_original>
// kernel: tpu_custom_call.1
$region0: #{tpu_custom_call.1}
  #allocation0 [shape = 'u32[]', space=smem, size = 0x4, offset = 0x4, fixed_abs, tag = 'smem constant byte address 0x4 - core index']
  #allocation1 [shape = 'u32[144,128]{1,0:T(1,128)}', space=vmem, size = 0x12000, scoped, tag = 'internal scratch']
  #allocation2 [shape = 'f32[8,128]{1,0:T(8,128)}', space=vmem, size = 0x1000, scoped, tag = 'scratch operand']
  %s0 = inlined_call_operand.hbm [shape: f32[1,8,128], index: 0, kind: input, shape index: {}]
  %s1 = inlined_call_operand.hbm [shape: f32[8,128], index: 1, kind: input, shape index: {}]
  %s2 = inlined_call_operand.hbm [shape: f32[256,128], index: 2, kind: input, shape index: {}]
  %s3 = inlined_call_operand.hbm [shape: f32[1,128], index: 3, kind: input, shape index: {}]
  %s4 = inlined_call_operand.hbm [shape: f32[128,128], index: 4, kind: input, shape index: {}]
  %s5 = inlined_call_operand.hbm [shape: f32[1,128], index: 5, kind: input, shape index: {}]
  %s6 = inlined_call_operand.hbm [shape: f32[1,8,128], index: 6, kind: output, shape index: {0}]
  %s7 = inlined_call_operand.hbm [shape: f32[8,128], index: 7, kind: output, shape index: {1}]
  %8 = xla_tuple %s6, %s7
  %s9 = sld [smem:[#allocation0]]
  $region70: #{tpu_custom_call.1} parent=0
    _
  %s11 = ssub.s32 1, %s9
  %s12 = scalar_select 0, %s11, %s9
  $region1: #{tpu_custom_call.1} parent=0
    #allocation3 [shape = 'u8[4096]{0}', space=vmem, size = 0x1000, scoped, tag = 'input window, operand 0, single buffered']
    #allocation4 [shape = 's32[1]{0}', space=sflag, size = 0x4, scoped, tag = 'scoped memory for tpu_custom_call.1']
    #allocation5 [shape = 's32[1]{0}', space=sflag, size = 0x4, scoped, tag = 'scoped memory for tpu_custom_call.1']
    #allocation6 [shape = 'u8[4096]{0}', space=vmem, size = 0x1000, scoped, tag = 'input window, operand 1, single buffered']
    #allocation7 [shape = 's32[1]{0}', space=sflag, size = 0x4, scoped, tag = 'scoped memory for tpu_custom_call.1']
    #allocation8 [shape = 'u8[131072]{0}', space=vmem, size = 0x20000, scoped, tag = 'input window, operand 2, single buffered']
    #allocation9 [shape = 'u8[512]{0}', space=vmem, size = 0x400, scoped, tag = 'input window, operand 3, single buffered']
    #allocation10 [shape = 's32[1]{0}', space=sflag, size = 0x4, scoped, tag = 'scoped memory for tpu_custom_call.1']
    #allocation11 [shape = 'u8[65536]{0}', space=vmem, size = 0x10000, scoped, tag = 'input window, operand 4, single buffered']
    #allocation12 [shape = 'u8[512]{0}', space=vmem, size = 0x400, scoped, tag = 'input window, operand 5, single buffered']
    #allocation13 [shape = 's32[1]{0}', space=sflag, size = 0x4, scoped, tag = 'scoped memory for tpu_custom_call.1']
    #allocation14 [shape = 'u8[4096]{0}', space=vmem, size = 0x1000, scoped, tag = 'output window, operand 0, single buffered']
    #allocation15 [shape = 'u8[4096]{0}', space=vmem, size = 0x1000, scoped, tag = 'output window, operand 1, single buffered']
    #allocation16 [shape = 's32[1]{0}', space=sflag, size = 0x4, scoped, tag = 'scoped memory for tpu_custom_call.1']
    %13 = vsyncpa [#allocation4], 0
    %14 = vsyncpa [#allocation7], 0
    %15 = vsyncpa [#allocation10], 0
    %16 = vsyncpa [#allocation13], 0
    %17 = vsyncpa [#allocation5], 0
    %18 = vsyncpa [#allocation16], 0
    // Predicated region
    $region2: #{tpu_custom_call.1} parent=1 // pred_check
      _
    $region3: #{tpu_custom_call.1} parent=1 // pred_check_branch
      %20 = sbr.rel (0) target = $region5
    $region4: #{tpu_custom_call.1} parent=1 // pred_region
      %s22 = ssub.s32 128, 128
      %23 = vsyncadd [#allocation4], %s22
      %s25 = sshll.u32 [#allocation3], 4
      %s26 = int_to_ptr.vmem [resolvable:$true] %s25
      %28 = dma.hbm_to_vmem [thread:$0]  %s0, 128, %s26, [#allocation4]
    $region5: #{tpu_custom_call.1} parent=1 // pred_fallthru
      _
    // Predicated region
    $region6: #{tpu_custom_call.1} parent=1 // pred_check
      _
    $region7: #{tpu_custom_call.1} parent=1 // pred_check_branch
      %30 = sbr.rel (0) target = $region9
    $region8: #{tpu_custom_call.1} parent=1 // pred_region
      %s32 = ssub.s32 128, 128
      %33 = vsyncadd [#allocation7], %s32
      %s35 = sshll.u32 [#allocation6], 4
      %s36 = int_to_ptr.vmem [resolvable:$true] %s35
      %38 = dma.hbm_to_vmem [thread:$0]  %s1, 128, %s36, [#allocation7]
    $region9: #{tpu_custom_call.1} parent=1 // pred_fallthru
      _
    // Predicated region
    $region10: #{tpu_custom_call.1} parent=1 // pred_check
      _
    $region11: #{tpu_custom_call.1} parent=1 // pred_check_branch
      %40 = sbr.rel (0) target = $region13
    $region12: #{tpu_custom_call.1} parent=1 // pred_region
      %s42 = ssub.s32 4096, 4096
      %43 = vsyncadd [#allocation7], %s42
      %s44 = sshll.u32 [#allocation8], 4
      %s45 = int_to_ptr.vmem [resolvable:$true] %s44
      %50 = dma.hbm_to_vmem [thread:$0]  %s2, 4096, %s45, [#allocation7], 128, 128, 8
    $region13: #{tpu_custom_call.1} parent=1 // pred_fallthru
      _
    // Predicated region
    $region14: #{tpu_custom_call.1} parent=1 // pred_check
      _
    $region15: #{tpu_custom_call.1} parent=1 // pred_check_branch
      %52 = sbr.rel (0) target = $region17
    $region16: #{tpu_custom_call.1} parent=1 // pred_region
      %s54 = ssub.s32 16, 16
      %55 = vsyncadd [#allocation10], %s54
      %s57 = sshll.u32 [#allocation9], 4
      %s58 = int_to_ptr.vmem [resolvable:$true] %s57
      %60 = dma.hbm_to_vmem [thread:$0]  %s3, 16, %s58, [#allocation10]
    $region17: #{tpu_custom_call.1} parent=1 // pred_fallthru
      _
    // Predicated region
    $region18: #{tpu_custom_call.1} parent=1 // pred_check
      _
    $region19: #{tpu_custom_call.1} parent=1 // pred_check_branch
      %62 = sbr.rel (0) target = $region21
    $region20: #{tpu_custom_call.1} parent=1 // pred_region
      %s64 = ssub.s32 2048, 2048
      %65 = vsyncadd [#allocation10], %s64
      %s66 = sshll.u32 [#allocation11], 4
      %s67 = int_to_ptr.vmem [resolvable:$true] %s66
      %72 = dma.hbm_to_vmem [thread:$0]  %s4, 2048, %s67, [#allocation10], 128, 128, 8
    $region21: #{tpu_custom_call.1} parent=1 // pred_fallthru
      _
    // Predicated region
    $region22: #{tpu_custom_call.1} parent=1 // pred_check
      _
    $region23: #{tpu_custom_call.1} parent=1 // pred_check_branch
      %74 = sbr.rel (0) target = $region25
    $region24: #{tpu_custom_call.1} parent=1 // pred_region
      %s76 = ssub.s32 16, 16
      %77 = vsyncadd [#allocation13], %s76
      %s79 = sshll.u32 [#allocation12], 4
      %s80 = int_to_ptr.vmem [resolvable:$true] %s79
      %82 = dma.hbm_to_vmem [thread:$0]  %s5, 16, %s80, [#allocation13]
    $region25: #{tpu_custom_call.1} parent=1 // pred_fallthru
      _
    // Predicated region
    $region26: #{tpu_custom_call.1} parent=1 // pred_check
      _
    $region27: #{tpu_custom_call.1} parent=1 // pred_check_branch
      %84 = sbr.rel (0) target = $region29
    $region28: #{tpu_custom_call.1} parent=1 // pred_region
      %85 = dma.done [#allocation4], 128
    $region29: #{tpu_custom_call.1} parent=1 // pred_fallthru
      _
    // Predicated region
    $region30: #{tpu_custom_call.1} parent=1 // pred_check
      _
    $region31: #{tpu_custom_call.1} parent=1 // pred_check_branch
      %87 = sbr.rel (0) target = $region33
    $region32: #{tpu_custom_call.1} parent=1 // pred_region
      %88 = dma.done [#allocation7], 128
    $region33: #{tpu_custom_call.1} parent=1 // pred_fallthru
      _
    // Predicated region
    $region34: #{tpu_custom_call.1} parent=1 // pred_check
      _
    $region35: #{tpu_custom_call.1} parent=1 // pred_check_branch
      %90 = sbr.rel (0) target = $region37
    $region36: #{tpu_custom_call.1} parent=1 // pred_region
      %91 = dma.done [#allocation7], 4096
    $region37: #{tpu_custom_call.1} parent=1 // pred_fallthru
      _
    // Predicated region
    $region38: #{tpu_custom_call.1} parent=1 // pred_check
      _
    $region39: #{tpu_custom_call.1} parent=1 // pred_check_branch
      %93 = sbr.rel (0) target = $region41
    $region40: #{tpu_custom_call.1} parent=1 // pred_region
      %94 = dma.done [#allocation10], 16
    $region41: #{tpu_custom_call.1} parent=1 // pred_fallthru
      _
    // Predicated region
    $region42: #{tpu_custom_call.1} parent=1 // pred_check
      _
    $region43: #{tpu_custom_call.1} parent=1 // pred_check_branch
      %96 = sbr.rel (0) target = $region45
    $region44: #{tpu_custom_call.1} parent=1 // pred_region
      %97 = dma.done [#allocation10], 2048
    $region45: #{tpu_custom_call.1} parent=1 // pred_fallthru
      _
    // Predicated region
    $region46: #{tpu_custom_call.1} parent=1 // pred_check
      _
    $region47: #{tpu_custom_call.1} parent=1 // pred_check_branch
      %99 = sbr.rel (0) target = $region49
    $region48: #{tpu_custom_call.1} parent=1 // pred_region
      %100 = dma.done [#allocation13], 16
    $region49: #{tpu_custom_call.1} parent=1 // pred_fallthru
      _
    %p101 = scmp.eq.s32.totalorder 0, 0
    // Predicated region
    $region50: #{tpu_custom_call.1} parent=1 // pred_check
      %p102 = pneg %p101
    $region51: #{tpu_custom_call.1} parent=1 // pred_check_branch
      %104 = sbr.rel (%p102) target = $region53
    $region52: #{tpu_custom_call.1} parent=1 // pred_region
      %v105 = vld [vmem:[#allocation6] sm:$0xff]
      %106 = vst [vmem:[#allocation2] sm:$0xff] %v105
    $region53: #{tpu_custom_call.1} parent=1 // pred_fallthru
      _
    %v107 = vld [vmem:[#allocation2] sm:$0xff]
    %v108 = vld [vmem:[#allocation3] sm:$0xff]
    %v109 = vtanh.pop %v107
    %v110 = vmax.f32 %v109, 0.0
    %v111 = vld [vmem:[#allocation8] sm:$0xff]
    %v112 = vld [vmem:[#allocation8 + $0x8] sm:$0xff]
    %v113 = vld [vmem:[#allocation8 + $0x10] sm:$0xff]
    %v114 = vld [vmem:[#allocation8 + $0x18] sm:$0xff]
    %v115 = vld [vmem:[#allocation8 + $0x20] sm:$0xff]
    %v116 = vld [vmem:[#allocation8 + $0x28] sm:$0xff]
    %v117 = vld [vmem:[#allocation8 + $0x30] sm:$0xff]
    %v118 = vld [vmem:[#allocation8 + $0x38] sm:$0xff]
    %v119 = vld [vmem:[#allocation8 + $0x40] sm:$0xff]
    %v120 = vld [vmem:[#allocation8 + $0x48] sm:$0xff]
    %v121 = vld [vmem:[#allocation8 + $0x50] sm:$0xff]
    %v122 = vld [vmem:[#allocation8 + $0x58] sm:$0xff]
    %v123 = vld [vmem:[#allocation8 + $0x60] sm:$0xff]
    %v124 = vld [vmem:[#allocation8 + $0x68] sm:$0xff]
    %v125 = vld [vmem:[#allocation8 + $0x70] sm:$0xff]
    %v126 = vld [vmem:[#allocation8 + $0x78] sm:$0xff]
    %v127 = vld [vmem:[#allocation8 + $0x80] sm:$0xff]
    %v128 = vld [vmem:[#allocation8 + $0x88] sm:$0xff]
    %v129 = vld [vmem:[#allocation8 + $0x90] sm:$0xff]
    %v130 = vld [vmem:[#allocation8 + $0x98] sm:$0xff]
    %v131 = vld [vmem:[#allocation8 + $0xa0] sm:$0xff]
    %v132 = vld [vmem:[#allocation8 + $0xa8] sm:$0xff]
    %v133 = vld [vmem:[#allocation8 + $0xb0] sm:$0xff]
    %v134 = vld [vmem:[#allocation8 + $0xb8] sm:$0xff]
    %v135 = vld [vmem:[#allocation8 + $0xc0] sm:$0xff]
    %v136 = vld [vmem:[#allocation8 + $0xc8] sm:$0xff]
    %v137 = vld [vmem:[#allocation8 + $0xd0] sm:$0xff]
    %v138 = vld [vmem:[#allocation8 + $0xd8] sm:$0xff]
    %v139 = vld [vmem:[#allocation8 + $0xe0] sm:$0xff]
    %v140 = vld [vmem:[#allocation8 + $0xe8] sm:$0xff]
    %v141 = vld [vmem:[#allocation8 + $0xf0] sm:$0xff]
    %v142 = vld [vmem:[#allocation8 + $0xf8] sm:$0xff]
    %v143 = vld [vmem:[#allocation9] sm:$0x1]
    %v145 = vlaneseq
    %v146 = vshrl.u32 %v145, 7
    %v147 = vsub.s32 0, %v146
    %v148 = vrot.slane %v143, %v147
    %150 = vmatprep.subr.mxu0 0.0
    %151 = vmatpush1.msra.mxu0 %v111
    %152 = vmatprep.subr.mxu0 0.0
    %153 = vmatpush1.msra.mxu0 %v112
    %154 = vmatprep.subr.mxu0 0.0
    %155 = vmatpush1.msra.mxu0 %v113
    %156 = vmatprep.subr.mxu0 0.0
    %157 = vmatpush1.msra.mxu0 %v114
    %158 = vmatprep.subr.mxu0 0.0
    %159 = vmatpush1.msra.mxu0 %v115
    %160 = vmatprep.subr.mxu0 0.0
    %161 = vmatpush1.msra.mxu0 %v116
    %162 = vmatprep.subr.mxu0 0.0
    %163 = vmatpush1.msra.mxu0 %v117
    %164 = vmatprep.subr.mxu0 0.0
    %165 = vmatpush1.msra.mxu0 %v118
    %166 = vmatprep.subr.mxu0 0.0
    %167 = vmatpush1.msra.mxu0 %v119
    %168 = vmatprep.subr.mxu0 0.0
    %169 = vmatpush1.msra.mxu0 %v120
    %170 = vmatprep.subr.mxu0 0.0
    %171 = vmatpush1.msra.mxu0 %v121
    %172 = vmatprep.subr.mxu0 0.0
    %173 = vmatpush1.msra.mxu0 %v122
    %174 = vmatprep.subr.mxu0 0.0
    %175 = vmatpush1.msra.mxu0 %v123
    %176 = vmatprep.subr.mxu0 0.0
    %177 = vmatpush1.msra.mxu0 %v124
    %178 = vmatprep.subr.mxu0 0.0
    %179 = vmatpush1.msra.mxu0 %v125
    %180 = vmatprep.subr.mxu0 0.0
    %181 = vmatpush1.msra.mxu0 %v126
    %182 = vmatprep.subr.mxu0 0.0
    %183 = vmatpush1.msra.mxu0 %v127
    %184 = vmatprep.subr.mxu0 0.0
    %185 = vmatpush1.msra.mxu0 %v128
    %186 = vmatprep.subr.mxu0 0.0
    %187 = vmatpush1.msra.mxu0 %v129
    %188 = vmatprep.subr.mxu0 0.0
    %189 = vmatpush1.msra.mxu0 %v130
    %190 = vmatprep.subr.mxu0 0.0
    %191 = vmatpush1.msra.mxu0 %v131
    %192 = vmatprep.subr.mxu0 0.0
    %193 = vmatpush1.msra.mxu0 %v132
    %194 = vmatprep.subr.mxu0 0.0
    %195 = vmatpush1.msra.mxu0 %v133
    %196 = vmatprep.subr.mxu0 0.0
    %197 = vmatpush1.msra.mxu0 %v134
    %198 = vmatprep.subr.mxu0 0.0
    %199 = vmatpush1.msra.mxu0 %v135
    %200 = vmatprep.subr.mxu0 0.0
    %201 = vmatpush1.msra.mxu0 %v136
    %202 = vmatprep.subr.mxu0 0.0
    %203 = vmatpush1.msra.mxu0 %v137
    %204 = vmatprep.subr.mxu0 0.0
    %205 = vmatpush1.msra.mxu0 %v138
    %206 = vmatprep.subr.mxu0 0.0
    %207 = vmatpush1.msra.mxu0 %v139
    %208 = vmatprep.subr.mxu0 0.0
    %209 = vmatpush1.msra.mxu0 %v140
    %210 = vmatprep.subr.mxu0 0.0
    %211 = vmatpush1.msra.mxu0 %v141
    %212 = vmatprep.subr.mxu0 0.0
    %213 = vmatpush1.msra.mxu0 %v142
    %214 = vmatprep.mubr.f32.mxu0 %v108
    %215 = vmatmul.mubr.f32.gmra.mrb[0].mxu0 %v110
    %v216 = vpop.f32.mrb[0].mxu0
    %v217 = vadd.f32 %v148, %v216
    %v218 = vpop.f32.mrb[0].mxu0
    %219 = vdwg.mxu0
    %v220 = vsub.f32 %v217, %v107
    %v221 = vmul.f32 %v220, 0.2
    %v222 = vadd.f32 %v107, %v221
    %v223 = vtanh.pop %v222
    %v224 = vmax.f32 %v223, 0.0
    %v225 = vld [vmem:[#allocation11] sm:$0xff]
    %v226 = vld [vmem:[#allocation11 + $0x8] sm:$0xff]
    %v227 = vld [vmem:[#allocation11 + $0x10] sm:$0xff]
    %v228 = vld [vmem:[#allocation11 + $0x18] sm:$0xff]
    %v229 = vld [vmem:[#allocation11 + $0x20] sm:$0xff]
    %v230 = vld [vmem:[#allocation11 + $0x28] sm:$0xff]
    %v231 = vld [vmem:[#allocation11 + $0x30] sm:$0xff]
    %v232 = vld [vmem:[#allocation11 + $0x38] sm:$0xff]
    %v233 = vld [vmem:[#allocation11 + $0x40] sm:$0xff]
    %v234 = vld [vmem:[#allocation11 + $0x48] sm:$0xff]
    %v235 = vld [vmem:[#allocation11 + $0x50] sm:$0xff]
    %v236 = vld [vmem:[#allocation11 + $0x58] sm:$0xff]
    %v237 = vld [vmem:[#allocation11 + $0x60] sm:$0xff]
    %v238 = vld [vmem:[#allocation11 + $0x68] sm:$0xff]
    %v239 = vld [vmem:[#allocation11 + $0x70] sm:$0xff]
    %v240 = vld [vmem:[#allocation11 + $0x78] sm:$0xff]
    %v241 = vld [vmem:[#allocation12] sm:$0x1]
    %v243 = vlaneseq
    %v244 = vshrl.u32 %v243, 7
    %v245 = vsub.s32 0, %v244
    %v246 = vrot.slane %v241, %v245
    %248 = vmatprep.subr.mxu0 0.0
    %249 = vmatpush1.msra.mxu0 %v225
    %250 = vmatprep.subr.mxu0 0.0
    %251 = vmatpush1.msra.mxu0 %v226
    %252 = vmatprep.subr.mxu0 0.0
    %253 = vmatpush1.msra.mxu0 %v227
    %254 = vmatprep.subr.mxu0 0.0
    %255 = vmatpush1.msra.mxu0 %v228
    %256 = vmatprep.subr.mxu0 0.0
    %257 = vmatpush1.msra.mxu0 %v229
    %258 = vmatprep.subr.mxu0 0.0
    %259 = vmatpush1.msra.mxu0 %v230
    %260 = vmatprep.subr.mxu0 0.0
    %261 = vmatpush1.msra.mxu0 %v231
    %262 = vmatprep.subr.mxu0 0.0
    %263 = vmatpush1.msra.mxu0 %v232
    %264 = vmatprep.subr.mxu0 0.0
    %265 = vmatpush1.msra.mxu0 %v233
    %266 = vmatprep.subr.mxu0 0.0
    %267 = vmatpush1.msra.mxu0 %v234
    %268 = vmatprep.subr.mxu0 0.0
    %269 = vmatpush1.msra.mxu0 %v235
    %270 = vmatprep.subr.mxu0 0.0
    %271 = vmatpush1.msra.mxu0 %v236
    %272 = vmatprep.subr.mxu0 0.0
    %273 = vmatpush1.msra.mxu0 %v237
    %274 = vmatprep.subr.mxu0 0.0
    %275 = vmatpush1.msra.mxu0 %v238
    %276 = vmatprep.subr.mxu0 0.0
    %277 = vmatpush1.msra.mxu0 %v239
    %278 = vmatprep.subr.mxu0 0.0
    %279 = vmatpush1.msra.mxu0 %v240
    %280 = vmatprep.subr.mxu0 0.0
    %281 = vmatpush1.msra.mxu0 0.0
    %282 = vmatprep.subr.mxu0 0.0
    %283 = vmatpush1.msra.mxu0 0.0
    %284 = vmatprep.subr.mxu0 0.0
    %285 = vmatpush1.msra.mxu0 0.0
    %286 = vmatprep.subr.mxu0 0.0
    %287 = vmatpush1.msra.mxu0 0.0
    %288 = vmatprep.subr.mxu0 0.0
    %289 = vmatpush1.msra.mxu0 0.0
    %290 = vmatprep.subr.mxu0 0.0
    %291 = vmatpush1.msra.mxu0 0.0
    %292 = vmatprep.subr.mxu0 0.0
    %293 = vmatpush1.msra.mxu0 0.0
    %294 = vmatprep.subr.mxu0 0.0
    %295 = vmatpush1.msra.mxu0 0.0
    %296 = vmatprep.subr.mxu0 0.0
    %297 = vmatpush1.msra.mxu0 0.0
    %298 = vmatprep.subr.mxu0 0.0
    %299 = vmatpush1.msra.mxu0 0.0
    %300 = vmatprep.subr.mxu0 0.0
    %301 = vmatpush1.msra.mxu0 0.0
    %302 = vmatprep.subr.mxu0 0.0
    %303 = vmatpush1.msra.mxu0 0.0
    %304 = vmatprep.subr.mxu0 0.0
    %305 = vmatpush1.msra.mxu0 0.0
    %306 = vmatprep.subr.mxu0 0.0
    %307 = vmatpush1.msra.mxu0 0.0
    %308 = vmatprep.subr.mxu0 0.0
    %309 = vmatpush1.msra.mxu0 0.0
    %310 = vmatprep.subr.mxu0 0.0
    %311 = vmatpush1.msra.mxu0 0.0
    %312 = vmatprep.mubr.f32.mxu0 0.0
    %313 = vmatmul.mubr.f32.gmra.mrb[0].mxu0 %v224
    %v314 = vpop.f32.mrb[0].mxu0
    %v315 = vadd.f32 %v246, %v314
    %v316 = vpop.f32.mrb[0].mxu0
    %317 = vdwg.mxu0
    %318 = vst [vmem:[#allocation14] sm:$0xff] %v315
    %319 = vst [vmem:[#allocation2] sm:$0xff] %v222
    %320 = vst [vmem:[#allocation15] sm:$0xff] %v222
    // Predicated region
    $region54: #{tpu_custom_call.1} parent=1 // pred_check
      _
    $region55: #{tpu_custom_call.1} parent=1 // pred_check_branch
      %322 = sbr.rel (0) target = $region57
    $region56: #{tpu_custom_call.1} parent=1 // pred_region
      %s324 = ssub.s32 128, 128
      %325 = vsyncadd [#allocation5], %s324
      %s327 = sshll.u32 [#allocation14], 4
      %s328 = int_to_ptr.vmem [resolvable:$true] %s327
      %330 = dma.vmem_to_hbm [thread:$0]  %s328, 128, %s6, [#allocation5]
    $region57: #{tpu_custom_call.1} parent=1 // pred_fallthru
      _
    // Predicated region
    $region58: #{tpu_custom_call.1} parent=1 // pred_check
      _
    $region59: #{tpu_custom_call.1} parent=1 // pred_check_branch
      %332 = sbr.rel (0) target = $region61
    $region60: #{tpu_custom_call.1} parent=1 // pred_region
      %s334 = ssub.s32 128, 128
      %335 = vsyncadd [#allocation16], %s334
      %s337 = sshll.u32 [#allocation15], 4
      %s338 = int_to_ptr.vmem [resolvable:$true] %s337
      %340 = dma.vmem_to_hbm [thread:$0]  %s338, 128, %s7, [#allocation16]
    $region61: #{tpu_custom_call.1} parent=1 // pred_fallthru
      _
    // Predicated region
    $region62: #{tpu_custom_call.1} parent=1 // pred_check
      _
    $region63: #{tpu_custom_call.1} parent=1 // pred_check_branch
      %342 = sbr.rel (0) target = $region65
    $region64: #{tpu_custom_call.1} parent=1 // pred_region
      %343 = dma.done [#allocation5], 128
    $region65: #{tpu_custom_call.1} parent=1 // pred_fallthru
      _
    // Predicated region
    $region66: #{tpu_custom_call.1} parent=1 // pred_check
      _
    $region67: #{tpu_custom_call.1} parent=1 // pred_check_branch
      %345 = sbr.rel (0) target = $region69
    $region68: #{tpu_custom_call.1} parent=1 // pred_region
      %346 = dma.done [#allocation16], 128
    $region69: #{tpu_custom_call.1} parent=1 // pred_fallthru
      _
    %347 = vsyncpa [#allocation4], 1
    %348 = vsyncpa [#allocation7], 1
    %349 = vsyncpa [#allocation10], 1
    %350 = vsyncpa [#allocation13], 1
    %351 = vsyncpa [#allocation5], 1
    %352 = vsyncpa [#allocation16], 1

</llo_original>
